<compile_context>
chip_gen: v7x
topology: tpu7x:2x2x1
jax: 0.10.0
libtpu: 0.0.40
codegen_flags: <defaults>
</compile_context>

<pallas_src>
import jax
import jax.numpy as jnp
from jax.experimental import pallas as pl
from jax.experimental.pallas import tpu as pltpu

EPS = 1e-10               # allRank DEFAULT_EPS
PADDED_Y_VALUE = -1.0
NEG_BIG = -1e30           # finite "minus infinity" sentinel (exp(NEG_BIG) == 0 in f32)


def _listmle_kernel(preds_ref, out_ref):
    # preds_ref : predictions sorted by descending true label; padded slots == NEG_BIG
    #             [Bt, Np] f32 (finite everywhere)
    # out_ref   : per-slate listMLE sum                          [Bt, 1] f32
    preds = preds_ref[...]
    _, np_ = preds.shape
    neg_big = jnp.float32(NEG_BIG)

    # validity derived from the sentinel -> no second streamed input
    is_valid = preds > jnp.float32(0.5) * neg_big
    valid = is_valid.astype(jnp.float32)

    # max over valid entries (padded slots are already the minimum, NEG_BIG)
    max_pred = jnp.max(preds, axis=-1, keepdims=True)                 # [Bt, 1]
    s = preds - max_pred                                              # finite
    # exp(s) with padded slots exactly 0 (exp(-1e30) underflows cleanly in f32);
    # the where also keeps all-padded slates at exp_s == 0 (s would be 0 there).
    exp_s = jnp.exp(jnp.where(is_valid, s, neg_big))                  # [Bt, Np]

    # reversed (suffix) cumulative sum via one MXU matmul:
    #   triT[k, j] = 1.0 iff k >= j   =>   cumsums[b, j] = sum_{k >= j} exp_s[b, k]
    k_idx = jax.lax.broadcasted_iota(jnp.int32, (np_, np_), 0)
    j_idx = jax.lax.broadcasted_iota(jnp.int32, (np_, np_), 1)
    triT = (k_idx >= j_idx).astype(jnp.float32)                        # [Np, Np]
    cumsums = jnp.dot(exp_s, triT,
                      preferred_element_type=jnp.float32,
                      precision=jax.lax.Precision.HIGHEST)             # [Bt, Np]

    obs = (jnp.log(cumsums + EPS) - s) * valid                         # padded -> 0
    out_ref[...] = jnp.sum(obs, axis=-1, keepdims=True)                # [Bt, 1]


def _round_up(x, m):
    return ((x + m - 1) // m) * m


def listmle_loss(pred_scores, labels, *, block_b_max=512):
    """listMLE loss: mean over slates of the per-slate Plackett-Luce NLL. Inputs: [B, N]."""
    y_pred = pred_scores.astype(jnp.float32)
    y_true = labels.astype(jnp.float32)
    B, N = y_pred.shape

    # glue (plain JAX): sort by descending true label, gather predictions
    order = jnp.argsort(y_true, axis=-1, descending=True)
    y_true_sorted = jnp.take_along_axis(y_true, order, axis=-1)
    preds_sorted = jnp.take_along_axis(y_pred, order, axis=-1)
    valid = y_true_sorted != PADDED_Y_VALUE

    # merge the validity mask into the predictions: padded slots -> NEG_BIG sentinel
    preds_masked = jnp.where(valid, preds_sorted, jnp.float32(NEG_BIG))

    # lane-pad N to a multiple of 128; choose a batch tile that fills the MXU
    # M-dim but keeps >= 2 grid steps for v7x megacore when the batch allows it.
    Np = max(128, _round_up(N, 128))
    Bt = min(block_b_max, max(8, _round_up(-(-B // 2), 8)))
    Bp = _round_up(max(B, Bt), Bt)

    # padded batch rows are fully invalid and contribute exactly 0
    preds_p = jnp.full((Bp, Np), NEG_BIG, jnp.float32).at[:B, :N].set(preds_masked)

    grid_b = Bp // Bt
    per_slate = pl.pallas_call(
        _listmle_kernel,
        out_shape=jax.ShapeDtypeStruct((Bp, 1), jnp.float32),
        grid=(grid_b,),
        in_specs=[pl.BlockSpec((Bt, Np), lambda i: (i, 0))],
        out_specs=pl.BlockSpec((Bt, 1), lambda i: (i, 0)),
        compiler_params=pltpu.CompilerParams(
            dimension_semantics=("parallel",),
            vmem_limit_bytes=32 * 1024 * 1024,  # fits v7x's 64 MiB physical with margin
        ),
        cost_estimate=pl.CostEstimate(
            flops=int(2 * Bp * Np * Np + 8 * Bp * Np),       # MXU suffix-sum + pointwise
            transcendentals=int(2 * Bp * Np),                # one exp + one log per slot
            bytes_accessed=int((Bp * Np + Bp) * 4),          # single input + per-slate out
        ),
    )(preds_p)

    return jnp.sum(per_slate[:B, 0]) / jnp.float32(B)


class PLDPOLoss:
    """Mirror of the PyTorch module: forward(pred_scores, labels) -> scalar listMLE loss."""

    def __call__(self, pred_scores, labels):
        return listmle_loss(pred_scores, labels)


def _reference_loss(pred_scores, labels):
    """Pure-JAX reference reproducing torch listMLE semantics (deterministic sort)."""
    y_pred = pred_scores.astype(jnp.float32)
    y_true = labels.astype(jnp.float32)

    order = jnp.argsort(y_true, axis=-1, descending=True)
    y_true_sorted = jnp.take_along_axis(y_true, order, axis=-1)
    preds_sorted = jnp.take_along_axis(y_pred, order, axis=-1)

    mask = y_true_sorted == PADDED_Y_VALUE
    preds_sorted = jnp.where(mask, -jnp.inf, preds_sorted)

    max_pred = jnp.max(preds_sorted, axis=-1, keepdims=True)
    s = preds_sorted - max_pred
    cumsums = jnp.cumsum(jnp.exp(s)[:, ::-1], axis=-1)[:, ::-1]
    obs = jnp.log(cumsums + EPS) - s
    obs = jnp.where(mask, 0.0, obs)
    return jnp.mean(jnp.sum(obs, axis=-1))


if __name__ == "__main__":
    key = jax.random.PRNGKey(0)
    B, N = 4, 16  # batch of 4 slates, 16 documents each

    k1, k2 = jax.random.split(key)
    pred_scores = jax.random.normal(k1, (B, N), dtype=jnp.float32)
    labels = jax.random.randint(k2, (B, N), 0, 5).astype(jnp.float32)
    # inject some padded entries (padded_value_indicator == -1)
    labels = labels.at[0, 13:].set(-1.0)
    labels = labels.at[2, 10:].set(-1.0)

    loss_fn = PLDPOLoss()
    loss = jax.block_until_ready(loss_fn(pred_scores, labels))
    ref = jax.block_until_ready(_reference_loss(pred_scores, labels))

    assert jnp.isfinite(loss), "non-finite loss"
    assert jnp.allclose(loss, ref, rtol=1e-5, atol=1e-5), (loss, ref)
    print("KERNEL_OK")
</pallas_src>

<mosaic_0001>
module attributes {stable_mosaic.version = 11 : i64} {
  func.func @_listmle_kernel(%arg0: i32, %arg1: memref<8x128xf32, #tpu.memory_space<vmem>>, %arg2: memref<8x1xf32, #tpu.memory_space<vmem>>) attributes {dimension_semantics = [#tpu.dimension_semantics<parallel>], iteration_bounds = array<i64: 1>, scalar_prefetch = 0 : i64, scratch_operands = 0 : i64, tpu.core_type = #tpu.core_type<tc>, window_params = [{transform_indices = @transform_0, window_bounds = array<i64: 8, 128>}, {transform_indices = @transform_1, window_bounds = array<i64: 8, 1>}]} {
    %c0 = arith.constant 0 : index
    %c0_0 = arith.constant 0 : index
    %0 = vector.load %arg1[%c0, %c0_0] : memref<8x128xf32, #tpu.memory_space<vmem>>, vector<8x128xf32>
    %cst = arith.constant 5.000000e-01 : f32
    %cst_1 = arith.constant -1.000000e+30 : f32
    %1 = arith.mulf %cst, %cst_1 : f32
    %2 = vector.broadcast %1 : f32 to vector<8x128xf32>
    %3 = arith.cmpf ogt, %0, %2 : vector<8x128xf32>
    %4 = arith.extui %3 : vector<8x128xi1> to vector<8x128xi32>
    %5 = arith.sitofp %4 : vector<8x128xi32> to vector<8x128xf32>
    %cst_2 = arith.constant dense<0xFF800000> : vector<8xf32>
    %6 = vector.multi_reduction <maximumf>, %0, %cst_2 [1] : vector<8x128xf32> to vector<8xf32>
    %7 = vector.shape_cast %6 : vector<8xf32> to vector<8x1xf32>
    %8 = vector.broadcast %7 : vector<8x1xf32> to vector<8x128xf32>
    %9 = arith.subf %0, %8 : vector<8x128xf32>
    %cst_3 = arith.constant -1.000000e+30 : f32
    %10 = vector.broadcast %cst_3 : f32 to vector<8x128xf32>
    %11 = arith.select %3, %9, %10 : vector<8x128xi1>, vector<8x128xf32>
    %12 = math.exp %11 : vector<8x128xf32>
    %13 = tpu.iota {dimensions = array<i32: 0>} : vector<128x128xi32>
    %14 = tpu.iota {dimensions = array<i32: 1>} : vector<128x128xi32>
    %15 = arith.cmpi sge, %13, %14 : vector<128x128xi32>
    %16 = arith.extui %15 : vector<128x128xi1> to vector<128x128xi32>
    %17 = arith.sitofp %16 : vector<128x128xi32> to vector<128x128xf32>
    %cst_4 = arith.constant dense<0.000000e+00> : vector<8x128xf32>
    %18 = tpu.matmul %12, %17, %cst_4 {dimension_numbers = #tpu.dot_dimension_numbers<[1], [0], [0], [1], [0, 0, 1, 1], [], []>, precision = #tpu.contract_precision<fp32>} : vector<8x128xf32>, vector<128x128xf32>, vector<8x128xf32> -> vector<8x128xf32>
    %cst_5 = arith.constant 1.000000e-10 : f32
    %19 = vector.broadcast %cst_5 : f32 to vector<8x128xf32>
    %20 = arith.addf %18, %19 : vector<8x128xf32>
    %21 = math.log %20 : vector<8x128xf32>
    %22 = arith.subf %21, %9 : vector<8x128xf32>
    %23 = arith.mulf %22, %5 : vector<8x128xf32>
    %cst_6 = arith.constant dense<0.000000e+00> : vector<8xf32>
    %24 = vector.multi_reduction <add>, %23, %cst_6 [1] : vector<8x128xf32> to vector<8xf32>
    %25 = vector.shape_cast %24 : vector<8xf32> to vector<8x1xf32>
    %c0_7 = arith.constant 0 : index
    %c0_8 = arith.constant 0 : index
    %26 = vector.load %arg2[%c0_7, %c0_8] : memref<8x1xf32, #tpu.memory_space<vmem>>, vector<8x1xf32>
    tpu.vector_store %arg2[%c0_7, %c0_8], %25 {strides = array<i32>} : memref<8x1xf32, #tpu.memory_space<vmem>>, vector<8x1xf32>,
    return
  }
  func.func @transform_0(%arg0: i32) -> (i32, i32) {
    %c0_i32 = arith.constant 0 : i32
    %c0_i32_0 = arith.constant 0 : i32
    return %arg0, %c0_i32 : i32, i32
  }
  func.func @transform_1(%arg0: i32) -> (i32, i32) {
    %c0_i32 = arith.constant 0 : i32
    %c0_i32_0 = arith.constant 0 : i32
    return %arg0, %c0_i32 : i32, i32
  }
}

</mosaic_0001>

<llo_original>
// kernel: tpu_custom_call.1
$region0: #{tpu_custom_call.1}
  #allocation0 [shape = 'u32[]', space=smem, size = 0x4, offset = 0x4, fixed_abs, tag = 'smem constant byte address 0x4 - core index']
  #allocation1 [shape = 'u32[144,128]{1,0:T(1,128)}', space=vmem, size = 0x12000, scoped, tag = 'internal scratch']
  %s0 = inlined_call_operand.hbm [shape: f32[8,128], index: 0, kind: input, shape index: {}]
  %s1 = inlined_call_operand.vmem [shape: f32[8,1], index: 1, kind: output, shape index: {}]
  %s2 = sld [smem:[#allocation0]]
  $region18: #{tpu_custom_call.1} parent=0
    _
  %s4 = ssub.s32 1, %s2
  %s5 = scalar_select 0, %s4, %s2
  $region1: #{tpu_custom_call.1} parent=0
    #allocation2 [shape = 'u8[4096]{0}', space=vmem, size = 0x1000, scoped, tag = 'input window, operand 0, single buffered']
    #allocation3 [shape = 's32[1]{0}', space=sflag, size = 0x4, scoped, tag = 'scoped memory for tpu_custom_call.1']
    %6 = vsyncpa [#allocation3], 0
    // Predicated region
    $region2: #{tpu_custom_call.1} parent=1 // pred_check
      _
    $region3: #{tpu_custom_call.1} parent=1 // pred_check_branch
      %8 = sbr.rel (0) target = $region5
    $region4: #{tpu_custom_call.1} parent=1 // pred_region
      %s10 = ssub.s32 128, 128
      %11 = vsyncadd [#allocation3], %s10
      %s13 = sshll.u32 [#allocation2], 4
      %s14 = int_to_ptr.vmem [resolvable:$true] %s13
      %16 = dma.hbm_to_vmem [thread:$0]  %s0, 128, %s14, [#allocation3]
    $region5: #{tpu_custom_call.1} parent=1 // pred_fallthru
      _
    // Predicated region
    $region6: #{tpu_custom_call.1} parent=1 // pred_check
      _
    $region7: #{tpu_custom_call.1} parent=1 // pred_check_branch
      %18 = sbr.rel (0) target = $region9
    $region8: #{tpu_custom_call.1} parent=1 // pred_region
      %19 = dma.done [#allocation3], 128
    $region9: #{tpu_custom_call.1} parent=1 // pred_fallthru
      _
    %v20 = vld [vmem:[#allocation2] sm:$0xff]
    %vm21 = vcmp.gt.f32.partialorder %v20, -5e+29
    %v22 = vsel %vm21, 1, 0
    %v23 = vcvt.s32.f32 %v22
    %24 = vmax.xlane.f32.xlu0 %v20
    %v25 = vpop.xlane.xlu0 %24
    %v26 = vsub.f32 %v20, %v25
    %v27 = vsel %vm21, %v26, -1e+30
    %v28 = vmul.f32 %v27, 1.442695
    %v29 = vpow.pop %v28
    %v30 = vlaneseq
    %v31 = vshrl.u32 %v30, 7
    %v32 = vadd.s32 %v31, 8
    %v33 = vadd.s32 %v31, 16
    %v34 = vadd.s32 %v31, 24
    %v35 = vadd.s32 %v31, 32
    %v36 = vadd.s32 %v31, 40
    %v37 = vadd.s32 %v31, 48
    %v38 = vadd.s32 %v31, 56
    %v39 = vadd.s32 %v31, 64
    %v40 = vadd.s32 %v31, 72
    %v41 = vadd.s32 %v31, 80
    %v42 = vadd.s32 %v31, 88
    %v43 = vadd.s32 %v31, 96
    %v44 = vadd.s32 %v31, 104
    %v45 = vadd.s32 %v31, 112
    %v46 = vadd.s32 %v31, 120
    %v47 = vlaneseq
    %v48 = vand.u32 %v47, 127
    %vm49 = vcmp.ge.s32.totalorder %v31, %v48
    %vm50 = vcmp.ge.s32.totalorder %v32, %v48
    %vm51 = vcmp.ge.s32.totalorder %v33, %v48
    %vm52 = vcmp.ge.s32.totalorder %v34, %v48
    %vm53 = vcmp.ge.s32.totalorder %v35, %v48
    %vm54 = vcmp.ge.s32.totalorder %v36, %v48
    %vm55 = vcmp.ge.s32.totalorder %v37, %v48
    %vm56 = vcmp.ge.s32.totalorder %v38, %v48
    %vm57 = vcmp.ge.s32.totalorder %v39, %v48
    %vm58 = vcmp.ge.s32.totalorder %v40, %v48
    %vm59 = vcmp.ge.s32.totalorder %v41, %v48
    %vm60 = vcmp.ge.s32.totalorder %v42, %v48
    %vm61 = vcmp.ge.s32.totalorder %v43, %v48
    %vm62 = vcmp.ge.s32.totalorder %v44, %v48
    %vm63 = vcmp.ge.s32.totalorder %v45, %v48
    %vm64 = vcmp.ge.s32.totalorder %v46, %v48
    %v65 = vsel %vm49, 1, 0
    %v66 = vsel %vm50, 1, 0
    %v67 = vsel %vm51, 1, 0
    %v68 = vsel %vm52, 1, 0
    %v69 = vsel %vm53, 1, 0
    %v70 = vsel %vm54, 1, 0
    %v71 = vsel %vm55, 1, 0
    %v72 = vsel %vm56, 1, 0
    %v73 = vsel %vm57, 1, 0
    %v74 = vsel %vm58, 1, 0
    %v75 = vsel %vm59, 1, 0
    %v76 = vsel %vm60, 1, 0
    %v77 = vsel %vm61, 1, 0
    %v78 = vsel %vm62, 1, 0
    %v79 = vsel %vm63, 1, 0
    %v80 = vsel %vm64, 1, 0
    %v81 = vcvt.s32.f32 %v65
    %v82 = vcvt.s32.f32 %v66
    %v83 = vcvt.s32.f32 %v67
    %v84 = vcvt.s32.f32 %v68
    %v85 = vcvt.s32.f32 %v69
    %v86 = vcvt.s32.f32 %v70
    %v87 = vcvt.s32.f32 %v71
    %v88 = vcvt.s32.f32 %v72
    %v89 = vcvt.s32.f32 %v73
    %v90 = vcvt.s32.f32 %v74
    %v91 = vcvt.s32.f32 %v75
    %v92 = vcvt.s32.f32 %v76
    %v93 = vcvt.s32.f32 %v77
    %v94 = vcvt.s32.f32 %v78
    %v95 = vcvt.s32.f32 %v79
    %v96 = vcvt.s32.f32 %v80
    %97 = vmatprep.subr.mxu0 0.0
    %v98 = vand.u32 %v81, 4294901760
    %99 = vmatpush1.msra.mxu0 %v98
    %100 = vmatprep.subr.mxu0 0.0
    %v101 = vand.u32 %v82, 4294901760
    %102 = vmatpush1.msra.mxu0 %v101
    %103 = vmatprep.subr.mxu0 0.0
    %v104 = vand.u32 %v83, 4294901760
    %105 = vmatpush1.msra.mxu0 %v104
    %106 = vmatprep.subr.mxu0 0.0
    %v107 = vand.u32 %v84, 4294901760
    %108 = vmatpush1.msra.mxu0 %v107
    %109 = vmatprep.subr.mxu0 0.0
    %v110 = vand.u32 %v85, 4294901760
    %111 = vmatpush1.msra.mxu0 %v110
    %112 = vmatprep.subr.mxu0 0.0
    %v113 = vand.u32 %v86, 4294901760
    %114 = vmatpush1.msra.mxu0 %v113
    %115 = vmatprep.subr.mxu0 0.0
    %v116 = vand.u32 %v87, 4294901760
    %117 = vmatpush1.msra.mxu0 %v116
    %118 = vmatprep.subr.mxu0 0.0
    %v119 = vand.u32 %v88, 4294901760
    %120 = vmatpush1.msra.mxu0 %v119
    %121 = vmatprep.subr.mxu0 0.0
    %v122 = vand.u32 %v89, 4294901760
    %123 = vmatpush1.msra.mxu0 %v122
    %124 = vmatprep.subr.mxu0 0.0
    %v125 = vand.u32 %v90, 4294901760
    %126 = vmatpush1.msra.mxu0 %v125
    %127 = vmatprep.subr.mxu0 0.0
    %v128 = vand.u32 %v91, 4294901760
    %129 = vmatpush1.msra.mxu0 %v128
    %130 = vmatprep.subr.mxu0 0.0
    %v131 = vand.u32 %v92, 4294901760
    %132 = vmatpush1.msra.mxu0 %v131
    %133 = vmatprep.subr.mxu0 0.0
    %v134 = vand.u32 %v93, 4294901760
    %135 = vmatpush1.msra.mxu0 %v134
    %136 = vmatprep.subr.mxu0 0.0
    %v137 = vand.u32 %v94, 4294901760
    %138 = vmatpush1.msra.mxu0 %v137
    %139 = vmatprep.subr.mxu0 0.0
    %v140 = vand.u32 %v95, 4294901760
    %141 = vmatpush1.msra.mxu0 %v140
    %142 = vmatprep.subr.mxu0 0.0
    %v143 = vand.u32 %v96, 4294901760
    %144 = vmatpush1.msra.mxu0 %v143
    %145 = vmatprep.subr.mxu0 0.0
    %146 = vmatpush1.msra.mxu0 0.0
    %147 = vmatprep.subr.mxu0 0.0
    %148 = vmatpush1.msra.mxu0 0.0
    %149 = vmatprep.subr.mxu0 0.0
    %150 = vmatpush1.msra.mxu0 0.0
    %151 = vmatprep.subr.mxu0 0.0
    %152 = vmatpush1.msra.mxu0 0.0
    %153 = vmatprep.subr.mxu0 0.0
    %154 = vmatpush1.msra.mxu0 0.0
    %155 = vmatprep.subr.mxu0 0.0
    %156 = vmatpush1.msra.mxu0 0.0
    %157 = vmatprep.subr.mxu0 0.0
    %158 = vmatpush1.msra.mxu0 0.0
    %159 = vmatprep.subr.mxu0 0.0
    %160 = vmatpush1.msra.mxu0 0.0
    %161 = vmatprep.subr.mxu0 0.0
    %162 = vmatpush1.msra.mxu0 0.0
    %163 = vmatprep.subr.mxu0 0.0
    %164 = vmatpush1.msra.mxu0 0.0
    %165 = vmatprep.subr.mxu0 0.0
    %166 = vmatpush1.msra.mxu0 0.0
    %167 = vmatprep.subr.mxu0 0.0
    %168 = vmatpush1.msra.mxu0 0.0
    %169 = vmatprep.subr.mxu0 0.0
    %170 = vmatpush1.msra.mxu0 0.0
    %171 = vmatprep.subr.mxu0 0.0
    %172 = vmatpush1.msra.mxu0 0.0
    %173 = vmatprep.subr.mxu0 0.0
    %174 = vmatpush1.msra.mxu0 0.0
    %175 = vmatprep.subr.mxu0 0.0
    %176 = vmatpush1.msra.mxu0 0.0
    %177 = vmatprep.mubr.f32.mxu0 0.0
    %v178 = vand.u32 %v29, 4294901760
    %v179 = vsub.f32 %v29, %v178
    %v180 = vand.u32 %v179, 4294901760
    %v181 = vsub.f32 %v179, %v180
    %v182 = vand.u32 %v181, 4294901760
    %183 = vmatmul.mubr.f32.gmra.mrb[0].mxu0 %v182
    %v184 = vpop.f32.mrb[0].mxu0
    %v185 = vadd.f32 1e-10, %v184
    %v186 = vpop.f32.mrb[0].mxu0
    %187 = vdwg.mxu0
    %188 = vmatprep.subr.mxu0 0.0
    %v189 = vand.u32 %v81, 4294901760
    %v190 = vsub.f32 %v81, %v189
    %v191 = vand.u32 %v190, 4294901760
    %v192 = vsub.f32 %v190, %v191
    %v193 = vand.u32 %v192, 4294901760
    %194 = vmatpush1.msra.mxu0 %v193
    %195 = vmatprep.subr.mxu0 0.0
    %v196 = vand.u32 %v82, 4294901760
    %v197 = vsub.f32 %v82, %v196
    %v198 = vand.u32 %v197, 4294901760
    %v199 = vsub.f32 %v197, %v198
    %v200 = vand.u32 %v199, 4294901760
    %201 = vmatpush1.msra.mxu0 %v200
    %202 = vmatprep.subr.mxu0 0.0
    %v203 = vand.u32 %v83, 4294901760
    %v204 = vsub.f32 %v83, %v203
    %v205 = vand.u32 %v204, 4294901760
    %v206 = vsub.f32 %v204, %v205
    %v207 = vand.u32 %v206, 4294901760
    %208 = vmatpush1.msra.mxu0 %v207
    %209 = vmatprep.subr.mxu0 0.0
    %v210 = vand.u32 %v84, 4294901760
    %v211 = vsub.f32 %v84, %v210
    %v212 = vand.u32 %v211, 4294901760
    %v213 = vsub.f32 %v211, %v212
    %v214 = vand.u32 %v213, 4294901760
    %215 = vmatpush1.msra.mxu0 %v214
    %216 = vmatprep.subr.mxu0 0.0
    %v217 = vand.u32 %v85, 4294901760
    %v218 = vsub.f32 %v85, %v217
    %v219 = vand.u32 %v218, 4294901760
    %v220 = vsub.f32 %v218, %v219
    %v221 = vand.u32 %v220, 4294901760
    %222 = vmatpush1.msra.mxu0 %v221
    %223 = vmatprep.subr.mxu0 0.0
    %v224 = vand.u32 %v86, 4294901760
    %v225 = vsub.f32 %v86, %v224
    %v226 = vand.u32 %v225, 4294901760
    %v227 = vsub.f32 %v225, %v226
    %v228 = vand.u32 %v227, 4294901760
    %229 = vmatpush1.msra.mxu0 %v228
    %230 = vmatprep.subr.mxu0 0.0
    %v231 = vand.u32 %v87, 4294901760
    %v232 = vsub.f32 %v87, %v231
    %v233 = vand.u32 %v232, 4294901760
    %v234 = vsub.f32 %v232, %v233
    %v235 = vand.u32 %v234, 4294901760
    %236 = vmatpush1.msra.mxu0 %v235
    %237 = vmatprep.subr.mxu0 0.0
    %v238 = vand.u32 %v88, 4294901760
    %v239 = vsub.f32 %v88, %v238
    %v240 = vand.u32 %v239, 4294901760
    %v241 = vsub.f32 %v239, %v240
    %v242 = vand.u32 %v241, 4294901760
    %243 = vmatpush1.msra.mxu0 %v242
    %244 = vmatprep.subr.mxu0 0.0
    %v245 = vand.u32 %v89, 4294901760
    %v246 = vsub.f32 %v89, %v245
    %v247 = vand.u32 %v246, 4294901760
    %v248 = vsub.f32 %v246, %v247
    %v249 = vand.u32 %v248, 4294901760
    %250 = vmatpush1.msra.mxu0 %v249
    %251 = vmatprep.subr.mxu0 0.0
    %v252 = vand.u32 %v90, 4294901760
    %v253 = vsub.f32 %v90, %v252
    %v254 = vand.u32 %v253, 4294901760
    %v255 = vsub.f32 %v253, %v254
    %v256 = vand.u32 %v255, 4294901760
    %257 = vmatpush1.msra.mxu0 %v256
    %258 = vmatprep.subr.mxu0 0.0
    %v259 = vand.u32 %v91, 4294901760
    %v260 = vsub.f32 %v91, %v259
    %v261 = vand.u32 %v260, 4294901760
    %v262 = vsub.f32 %v260, %v261
    %v263 = vand.u32 %v262, 4294901760
    %264 = vmatpush1.msra.mxu0 %v263
    %265 = vmatprep.subr.mxu0 0.0
    %v266 = vand.u32 %v92, 4294901760
    %v267 = vsub.f32 %v92, %v266
    %v268 = vand.u32 %v267, 4294901760
    %v269 = vsub.f32 %v267, %v268
    %v270 = vand.u32 %v269, 4294901760
    %271 = vmatpush1.msra.mxu0 %v270
    %272 = vmatprep.subr.mxu0 0.0
    %v273 = vand.u32 %v93, 4294901760
    %v274 = vsub.f32 %v93, %v273
    %v275 = vand.u32 %v274, 4294901760
    %v276 = vsub.f32 %v274, %v275
    %v277 = vand.u32 %v276, 4294901760
    %278 = vmatpush1.msra.mxu0 %v277
    %279 = vmatprep.subr.mxu0 0.0
    %v280 = vand.u32 %v94, 4294901760
    %v281 = vsub.f32 %v94, %v280
    %v282 = vand.u32 %v281, 4294901760
    %v283 = vsub.f32 %v281, %v282
    %v284 = vand.u32 %v283, 4294901760
    %285 = vmatpush1.msra.mxu0 %v284
    %286 = vmatprep.subr.mxu0 0.0
    %v287 = vand.u32 %v95, 4294901760
    %v288 = vsub.f32 %v95, %v287
    %v289 = vand.u32 %v288, 4294901760
    %v290 = vsub.f32 %v288, %v289
    %v291 = vand.u32 %v290, 4294901760
    %292 = vmatpush1.msra.mxu0 %v291
    %293 = vmatprep.subr.mxu0 0.0
    %v294 = vand.u32 %v96, 4294901760
    %v295 = vsub.f32 %v96, %v294
    %v296 = vand.u32 %v295, 4294901760
    %v297 = vsub.f32 %v295, %v296
    %v298 = vand.u32 %v297, 4294901760
    %299 = vmatpush1.msra.mxu0 %v298
    %300 = vmatprep.subr.mxu0 0.0
    %301 = vmatpush1.msra.mxu0 0.0
    %302 = vmatprep.subr.mxu0 0.0
    %303 = vmatpush1.msra.mxu0 0.0
    %304 = vmatprep.subr.mxu0 0.0
    %305 = vmatpush1.msra.mxu0 0.0
    %306 = vmatprep.subr.mxu0 0.0
    %307 = vmatpush1.msra.mxu0 0.0
    %308 = vmatprep.subr.mxu0 0.0
    %309 = vmatpush1.msra.mxu0 0.0
    %310 = vmatprep.subr.mxu0 0.0
    %311 = vmatpush1.msra.mxu0 0.0
    %312 = vmatprep.subr.mxu0 0.0
    %313 = vmatpush1.msra.mxu0 0.0
    %314 = vmatprep.subr.mxu0 0.0
    %315 = vmatpush1.msra.mxu0 0.0
    %316 = vmatprep.subr.mxu0 0.0
    %317 = vmatpush1.msra.mxu0 0.0
    %318 = vmatprep.subr.mxu0 0.0
    %319 = vmatpush1.msra.mxu0 0.0
    %320 = vmatprep.subr.mxu0 0.0
    %321 = vmatpush1.msra.mxu0 0.0
    %322 = vmatprep.subr.mxu0 0.0
    %323 = vmatpush1.msra.mxu0 0.0
    %324 = vmatprep.subr.mxu0 0.0
    %325 = vmatpush1.msra.mxu0 0.0
    %326 = vmatprep.subr.mxu0 0.0
    %327 = vmatpush1.msra.mxu0 0.0
    %328 = vmatprep.subr.mxu0 0.0
    %329 = vmatpush1.msra.mxu0 0.0
    %330 = vmatprep.subr.mxu0 0.0
    %331 = vmatpush1.msra.mxu0 0.0
    %332 = vmatprep.mubr.f32.mxu0 0.0
    %v333 = vand.u32 %v29, 4294901760
    %334 = vmatmul.mubr.f32.gmra.mrb[0].mxu0 %v333
    %v335 = vpop.f32.mrb[0].mxu0
    %v336 = vadd.f32 %v185, %v335
    %v337 = vpop.f32.mrb[0].mxu0
    %338 = vdwg.mxu0
    %339 = vmatprep.subr.mxu0 0.0
    %v340 = vand.u32 %v81, 4294901760
    %v341 = vsub.f32 %v81, %v340
    %342 = vmatpush1.msra.mxu0 %v341
    %343 = vmatprep.subr.mxu0 0.0
    %v344 = vand.u32 %v82, 4294901760
    %v345 = vsub.f32 %v82, %v344
    %346 = vmatpush1.msra.mxu0 %v345
    %347 = vmatprep.subr.mxu0 0.0
    %v348 = vand.u32 %v83, 4294901760
    %v349 = vsub.f32 %v83, %v348
    %350 = vmatpush1.msra.mxu0 %v349
    %351 = vmatprep.subr.mxu0 0.0
    %v352 = vand.u32 %v84, 4294901760
    %v353 = vsub.f32 %v84, %v352
    %354 = vmatpush1.msra.mxu0 %v353
    %355 = vmatprep.subr.mxu0 0.0
    %v356 = vand.u32 %v85, 4294901760
    %v357 = vsub.f32 %v85, %v356
    %358 = vmatpush1.msra.mxu0 %v357
    %359 = vmatprep.subr.mxu0 0.0
    %v360 = vand.u32 %v86, 4294901760
    %v361 = vsub.f32 %v86, %v360
    %362 = vmatpush1.msra.mxu0 %v361
    %363 = vmatprep.subr.mxu0 0.0
    %v364 = vand.u32 %v87, 4294901760
    %v365 = vsub.f32 %v87, %v364
    %366 = vmatpush1.msra.mxu0 %v365
    %367 = vmatprep.subr.mxu0 0.0
    %v368 = vand.u32 %v88, 4294901760
    %v369 = vsub.f32 %v88, %v368
    %370 = vmatpush1.msra.mxu0 %v369
    %371 = vmatprep.subr.mxu0 0.0
    %v372 = vand.u32 %v89, 4294901760
    %v373 = vsub.f32 %v89, %v372
    %374 = vmatpush1.msra.mxu0 %v373
    %375 = vmatprep.subr.mxu0 0.0
    %v376 = vand.u32 %v90, 4294901760
    %v377 = vsub.f32 %v90, %v376
    %378 = vmatpush1.msra.mxu0 %v377
    %379 = vmatprep.subr.mxu0 0.0
    %v380 = vand.u32 %v91, 4294901760
    %v381 = vsub.f32 %v91, %v380
    %382 = vmatpush1.msra.mxu0 %v381
    %383 = vmatprep.subr.mxu0 0.0
    %v384 = vand.u32 %v92, 4294901760
    %v385 = vsub.f32 %v92, %v384
    %386 = vmatpush1.msra.mxu0 %v385
    %387 = vmatprep.subr.mxu0 0.0
    %v388 = vand.u32 %v93, 4294901760
    %v389 = vsub.f32 %v93, %v388
    %390 = vmatpush1.msra.mxu0 %v389
    %391 = vmatprep.subr.mxu0 0.0
    %v392 = vand.u32 %v94, 4294901760
    %v393 = vsub.f32 %v94, %v392
    %394 = vmatpush1.msra.mxu0 %v393
    %395 = vmatprep.subr.mxu0 0.0
    %v396 = vand.u32 %v95, 4294901760
    %v397 = vsub.f32 %v95, %v396
    %398 = vmatpush1.msra.mxu0 %v397
    %399 = vmatprep.subr.mxu0 0.0
    %v400 = vand.u32 %v96, 4294901760
    %v401 = vsub.f32 %v96, %v400
    %402 = vmatpush1.msra.mxu0 %v401
    %403 = vmatprep.subr.mxu0 0.0
    %404 = vmatpush1.msra.mxu0 0.0
    %405 = vmatprep.subr.mxu0 0.0
    %406 = vmatpush1.msra.mxu0 0.0
    %407 = vmatprep.subr.mxu0 0.0
    %408 = vmatpush1.msra.mxu0 0.0
    %409 = vmatprep.subr.mxu0 0.0
    %410 = vmatpush1.msra.mxu0 0.0
    %411 = vmatprep.subr.mxu0 0.0
    %412 = vmatpush1.msra.mxu0 0.0
    %413 = vmatprep.subr.mxu0 0.0
    %414 = vmatpush1.msra.mxu0 0.0
    %415 = vmatprep.subr.mxu0 0.0
    %416 = vmatpush1.msra.mxu0 0.0
    %417 = vmatprep.subr.mxu0 0.0
    %418 = vmatpush1.msra.mxu0 0.0
    %419 = vmatprep.subr.mxu0 0.0
    %420 = vmatpush1.msra.mxu0 0.0
    %421 = vmatprep.subr.mxu0 0.0
    %422 = vmatpush1.msra.mxu0 0.0
    %423 = vmatprep.subr.mxu0 0.0
    %424 = vmatpush1.msra.mxu0 0.0
    %425 = vmatprep.subr.mxu0 0.0
    %426 = vmatpush1.msra.mxu0 0.0
    %427 = vmatprep.subr.mxu0 0.0
    %428 = vmatpush1.msra.mxu0 0.0
    %429 = vmatprep.subr.mxu0 0.0
    %430 = vmatpush1.msra.mxu0 0.0
    %431 = vmatprep.subr.mxu0 0.0
    %432 = vmatpush1.msra.mxu0 0.0
    %433 = vmatprep.subr.mxu0 0.0
    %434 = vmatpush1.msra.mxu0 0.0
    %435 = vmatprep.mubr.f32.mxu0 0.0
    %v436 = vand.u32 %v29, 4294901760
    %v437 = vsub.f32 %v29, %v436
    %438 = vmatmul.mubr.f32.gmra.mrb[0].mxu0 %v437
    %v439 = vpop.f32.mrb[0].mxu0
    %v440 = vadd.f32 %v336, %v439
    %v441 = vpop.f32.mrb[0].mxu0
    %442 = vdwg.mxu0
    %443 = vmatprep.subr.mxu0 0.0
    %v444 = vand.u32 %v81, 4294901760
    %445 = vmatpush1.msra.mxu0 %v444
    %446 = vmatprep.subr.mxu0 0.0
    %v447 = vand.u32 %v82, 4294901760
    %448 = vmatpush1.msra.mxu0 %v447
    %449 = vmatprep.subr.mxu0 0.0
    %v450 = vand.u32 %v83, 4294901760
    %451 = vmatpush1.msra.mxu0 %v450
    %452 = vmatprep.subr.mxu0 0.0
    %v453 = vand.u32 %v84, 4294901760
    %454 = vmatpush1.msra.mxu0 %v453
    %455 = vmatprep.subr.mxu0 0.0
    %v456 = vand.u32 %v85, 4294901760
    %457 = vmatpush1.msra.mxu0 %v456
    %458 = vmatprep.subr.mxu0 0.0
    %v459 = vand.u32 %v86, 4294901760
    %460 = vmatpush1.msra.mxu0 %v459
    %461 = vmatprep.subr.mxu0 0.0
    %v462 = vand.u32 %v87, 4294901760
    %463 = vmatpush1.msra.mxu0 %v462
    %464 = vmatprep.subr.mxu0 0.0
    %v465 = vand.u32 %v88, 4294901760
    %466 = vmatpush1.msra.mxu0 %v465
    %467 = vmatprep.subr.mxu0 0.0
    %v468 = vand.u32 %v89, 4294901760
    %469 = vmatpush1.msra.mxu0 %v468
    %470 = vmatprep.subr.mxu0 0.0
    %v471 = vand.u32 %v90, 4294901760
    %472 = vmatpush1.msra.mxu0 %v471
    %473 = vmatprep.subr.mxu0 0.0
    %v474 = vand.u32 %v91, 4294901760
    %475 = vmatpush1.msra.mxu0 %v474
    %476 = vmatprep.subr.mxu0 0.0
    %v477 = vand.u32 %v92, 4294901760
    %478 = vmatpush1.msra.mxu0 %v477
    %479 = vmatprep.subr.mxu0 0.0
    %v480 = vand.u32 %v93, 4294901760
    %481 = vmatpush1.msra.mxu0 %v480
    %482 = vmatprep.subr.mxu0 0.0
    %v483 = vand.u32 %v94, 4294901760
    %484 = vmatpush1.msra.mxu0 %v483
    %485 = vmatprep.subr.mxu0 0.0
    %v486 = vand.u32 %v95, 4294901760
    %487 = vmatpush1.msra.mxu0 %v486
    %488 = vmatprep.subr.mxu0 0.0
    %v489 = vand.u32 %v96, 4294901760
    %490 = vmatpush1.msra.mxu0 %v489
    %491 = vmatprep.subr.mxu0 0.0
    %492 = vmatpush1.msra.mxu0 0.0
    %493 = vmatprep.subr.mxu0 0.0
    %494 = vmatpush1.msra.mxu0 0.0
    %495 = vmatprep.subr.mxu0 0.0
    %496 = vmatpush1.msra.mxu0 0.0
    %497 = vmatprep.subr.mxu0 0.0
    %498 = vmatpush1.msra.mxu0 0.0
    %499 = vmatprep.subr.mxu0 0.0
    %500 = vmatpush1.msra.mxu0 0.0
    %501 = vmatprep.subr.mxu0 0.0
    %502 = vmatpush1.msra.mxu0 0.0
    %503 = vmatprep.subr.mxu0 0.0
    %504 = vmatpush1.msra.mxu0 0.0
    %505 = vmatprep.subr.mxu0 0.0
    %506 = vmatpush1.msra.mxu0 0.0
    %507 = vmatprep.subr.mxu0 0.0
    %508 = vmatpush1.msra.mxu0 0.0
    %509 = vmatprep.subr.mxu0 0.0
    %510 = vmatpush1.msra.mxu0 0.0
    %511 = vmatprep.subr.mxu0 0.0
    %512 = vmatpush1.msra.mxu0 0.0
    %513 = vmatprep.subr.mxu0 0.0
    %514 = vmatpush1.msra.mxu0 0.0
    %515 = vmatprep.subr.mxu0 0.0
    %516 = vmatpush1.msra.mxu0 0.0
    %517 = vmatprep.subr.mxu0 0.0
    %518 = vmatpush1.msra.mxu0 0.0
    %519 = vmatprep.subr.mxu0 0.0
    %520 = vmatpush1.msra.mxu0 0.0
    %521 = vmatprep.subr.mxu0 0.0
    %522 = vmatpush1.msra.mxu0 0.0
    %523 = vmatprep.mubr.f32.mxu0 0.0
    %v524 = vand.u32 %v29, 4294901760
    %v525 = vsub.f32 %v29, %v524
    %v526 = vand.u32 %v525, 4294901760
    %527 = vmatmul.mubr.f32.gmra.mrb[0].mxu0 %v526
    %v528 = vpop.f32.mrb[0].mxu0
    %v529 = vadd.f32 %v440, %v528
    %v530 = vpop.f32.mrb[0].mxu0
    %531 = vdwg.mxu0
    %532 = vmatprep.subr.mxu0 0.0
    %v533 = vand.u32 %v81, 4294901760
    %v534 = vsub.f32 %v81, %v533
    %v535 = vand.u32 %v534, 4294901760
    %536 = vmatpush1.msra.mxu0 %v535
    %537 = vmatprep.subr.mxu0 0.0
    %v538 = vand.u32 %v82, 4294901760
    %v539 = vsub.f32 %v82, %v538
    %v540 = vand.u32 %v539, 4294901760
    %541 = vmatpush1.msra.mxu0 %v540
    %542 = vmatprep.subr.mxu0 0.0
    %v543 = vand.u32 %v83, 4294901760
    %v544 = vsub.f32 %v83, %v543
    %v545 = vand.u32 %v544, 4294901760
    %546 = vmatpush1.msra.mxu0 %v545
    %547 = vmatprep.subr.mxu0 0.0
    %v548 = vand.u32 %v84, 4294901760
    %v549 = vsub.f32 %v84, %v548
    %v550 = vand.u32 %v549, 4294901760
    %551 = vmatpush1.msra.mxu0 %v550
    %552 = vmatprep.subr.mxu0 0.0
    %v553 = vand.u32 %v85, 4294901760
    %v554 = vsub.f32 %v85, %v553
    %v555 = vand.u32 %v554, 4294901760
    %556 = vmatpush1.msra.mxu0 %v555
    %557 = vmatprep.subr.mxu0 0.0
    %v558 = vand.u32 %v86, 4294901760
    %v559 = vsub.f32 %v86, %v558
    %v560 = vand.u32 %v559, 4294901760
    %561 = vmatpush1.msra.mxu0 %v560
    %562 = vmatprep.subr.mxu0 0.0
    %v563 = vand.u32 %v87, 4294901760
    %v564 = vsub.f32 %v87, %v563
    %v565 = vand.u32 %v564, 4294901760
    %566 = vmatpush1.msra.mxu0 %v565
    %567 = vmatprep.subr.mxu0 0.0
    %v568 = vand.u32 %v88, 4294901760
    %v569 = vsub.f32 %v88, %v568
    %v570 = vand.u32 %v569, 4294901760
    %571 = vmatpush1.msra.mxu0 %v570
    %572 = vmatprep.subr.mxu0 0.0
    %v573 = vand.u32 %v89, 4294901760
    %v574 = vsub.f32 %v89, %v573
    %v575 = vand.u32 %v574, 4294901760
    %576 = vmatpush1.msra.mxu0 %v575
    %577 = vmatprep.subr.mxu0 0.0
    %v578 = vand.u32 %v90, 4294901760
    %v579 = vsub.f32 %v90, %v578
    %v580 = vand.u32 %v579, 4294901760
    %581 = vmatpush1.msra.mxu0 %v580
    %582 = vmatprep.subr.mxu0 0.0
    %v583 = vand.u32 %v91, 4294901760
    %v584 = vsub.f32 %v91, %v583
    %v585 = vand.u32 %v584, 4294901760
    %586 = vmatpush1.msra.mxu0 %v585
    %587 = vmatprep.subr.mxu0 0.0
    %v588 = vand.u32 %v92, 4294901760
    %v589 = vsub.f32 %v92, %v588
    %v590 = vand.u32 %v589, 4294901760
    %591 = vmatpush1.msra.mxu0 %v590
    %592 = vmatprep.subr.mxu0 0.0
    %v593 = vand.u32 %v93, 4294901760
    %v594 = vsub.f32 %v93, %v593
    %v595 = vand.u32 %v594, 4294901760
    %596 = vmatpush1.msra.mxu0 %v595
    %597 = vmatprep.subr.mxu0 0.0
    %v598 = vand.u32 %v94, 4294901760
    %v599 = vsub.f32 %v94, %v598
    %v600 = vand.u32 %v599, 4294901760
    %601 = vmatpush1.msra.mxu0 %v600
    %602 = vmatprep.subr.mxu0 0.0
    %v603 = vand.u32 %v95, 4294901760
    %v604 = vsub.f32 %v95, %v603
    %v605 = vand.u32 %v604, 4294901760
    %606 = vmatpush1.msra.mxu0 %v605
    %607 = vmatprep.subr.mxu0 0.0
    %v608 = vand.u32 %v96, 4294901760
    %v609 = vsub.f32 %v96, %v608
    %v610 = vand.u32 %v609, 4294901760
    %611 = vmatpush1.msra.mxu0 %v610
    %612 = vmatprep.subr.mxu0 0.0
    %613 = vmatpush1.msra.mxu0 0.0
    %614 = vmatprep.subr.mxu0 0.0
    %615 = vmatpush1.msra.mxu0 0.0
    %616 = vmatprep.subr.mxu0 0.0
    %617 = vmatpush1.msra.mxu0 0.0
    %618 = vmatprep.subr.mxu0 0.0
    %619 = vmatpush1.msra.mxu0 0.0
    %620 = vmatprep.subr.mxu0 0.0
    %621 = vmatpush1.msra.mxu0 0.0
    %622 = vmatprep.subr.mxu0 0.0
    %623 = vmatpush1.msra.mxu0 0.0
    %624 = vmatprep.subr.mxu0 0.0
    %625 = vmatpush1.msra.mxu0 0.0
    %626 = vmatprep.subr.mxu0 0.0
    %627 = vmatpush1.msra.mxu0 0.0
    %628 = vmatprep.subr.mxu0 0.0
    %629 = vmatpush1.msra.mxu0 0.0
    %630 = vmatprep.subr.mxu0 0.0
    %631 = vmatpush1.msra.mxu0 0.0
    %632 = vmatprep.subr.mxu0 0.0
    %633 = vmatpush1.msra.mxu0 0.0
    %634 = vmatprep.subr.mxu0 0.0
    %635 = vmatpush1.msra.mxu0 0.0
    %636 = vmatprep.subr.mxu0 0.0
    %637 = vmatpush1.msra.mxu0 0.0
    %638 = vmatprep.subr.mxu0 0.0
    %639 = vmatpush1.msra.mxu0 0.0
    %640 = vmatprep.subr.mxu0 0.0
    %641 = vmatpush1.msra.mxu0 0.0
    %642 = vmatprep.subr.mxu0 0.0
    %643 = vmatpush1.msra.mxu0 0.0
    %644 = vmatprep.mubr.f32.mxu0 0.0
    %v645 = vand.u32 %v29, 4294901760
    %646 = vmatmul.mubr.f32.gmra.mrb[0].mxu0 %v645
    %v647 = vpop.f32.mrb[0].mxu0
    %v648 = vadd.f32 %v529, %v647
    %v649 = vpop.f32.mrb[0].mxu0
    %650 = vdwg.mxu0
    %651 = vmatprep.subr.mxu0 0.0
    %v652 = vand.u32 %v81, 4294901760
    %653 = vmatpush1.msra.mxu0 %v652
    %654 = vmatprep.subr.mxu0 0.0
    %v655 = vand.u32 %v82, 4294901760
    %656 = vmatpush1.msra.mxu0 %v655
    %657 = vmatprep.subr.mxu0 0.0
    %v658 = vand.u32 %v83, 4294901760
    %659 = vmatpush1.msra.mxu0 %v658
    %660 = vmatprep.subr.mxu0 0.0
    %v661 = vand.u32 %v84, 4294901760
    %662 = vmatpush1.msra.mxu0 %v661
    %663 = vmatprep.subr.mxu0 0.0
    %v664 = vand.u32 %v85, 4294901760
    %665 = vmatpush1.msra.mxu0 %v664
    %666 = vmatprep.subr.mxu0 0.0
    %v667 = vand.u32 %v86, 4294901760
    %668 = vmatpush1.msra.mxu0 %v667
    %669 = vmatprep.subr.mxu0 0.0
    %v670 = vand.u32 %v87, 4294901760
    %671 = vmatpush1.msra.mxu0 %v670
    %672 = vmatprep.subr.mxu0 0.0
    %v673 = vand.u32 %v88, 4294901760
    %674 = vmatpush1.msra.mxu0 %v673
    %675 = vmatprep.subr.mxu0 0.0
    %v676 = vand.u32 %v89, 4294901760
    %677 = vmatpush1.msra.mxu0 %v676
    %678 = vmatprep.subr.mxu0 0.0
    %v679 = vand.u32 %v90, 4294901760
    %680 = vmatpush1.msra.mxu0 %v679
    %681 = vmatprep.subr.mxu0 0.0
    %v682 = vand.u32 %v91, 4294901760
    %683 = vmatpush1.msra.mxu0 %v682
    %684 = vmatprep.subr.mxu0 0.0
    %v685 = vand.u32 %v92, 4294901760
    %686 = vmatpush1.msra.mxu0 %v685
    %687 = vmatprep.subr.mxu0 0.0
    %v688 = vand.u32 %v93, 4294901760
    %689 = vmatpush1.msra.mxu0 %v688
    %690 = vmatprep.subr.mxu0 0.0
    %v691 = vand.u32 %v94, 4294901760
    %692 = vmatpush1.msra.mxu0 %v691
    %693 = vmatprep.subr.mxu0 0.0
    %v694 = vand.u32 %v95, 4294901760
    %695 = vmatpush1.msra.mxu0 %v694
    %696 = vmatprep.subr.mxu0 0.0
    %v697 = vand.u32 %v96, 4294901760
    %698 = vmatpush1.msra.mxu0 %v697
    %699 = vmatprep.subr.mxu0 0.0
    %700 = vmatpush1.msra.mxu0 0.0
    %701 = vmatprep.subr.mxu0 0.0
    %702 = vmatpush1.msra.mxu0 0.0
    %703 = vmatprep.subr.mxu0 0.0
    %704 = vmatpush1.msra.mxu0 0.0
    %705 = vmatprep.subr.mxu0 0.0
    %706 = vmatpush1.msra.mxu0 0.0
    %707 = vmatprep.subr.mxu0 0.0
    %708 = vmatpush1.msra.mxu0 0.0
    %709 = vmatprep.subr.mxu0 0.0
    %710 = vmatpush1.msra.mxu0 0.0
    %711 = vmatprep.subr.mxu0 0.0
    %712 = vmatpush1.msra.mxu0 0.0
    %713 = vmatprep.subr.mxu0 0.0
    %714 = vmatpush1.msra.mxu0 0.0
    %715 = vmatprep.subr.mxu0 0.0
    %716 = vmatpush1.msra.mxu0 0.0
    %717 = vmatprep.subr.mxu0 0.0
    %718 = vmatpush1.msra.mxu0 0.0
    %719 = vmatprep.subr.mxu0 0.0
    %720 = vmatpush1.msra.mxu0 0.0
    %721 = vmatprep.subr.mxu0 0.0
    %722 = vmatpush1.msra.mxu0 0.0
    %723 = vmatprep.subr.mxu0 0.0
    %724 = vmatpush1.msra.mxu0 0.0
    %725 = vmatprep.subr.mxu0 0.0
    %726 = vmatpush1.msra.mxu0 0.0
    %727 = vmatprep.subr.mxu0 0.0
    %728 = vmatpush1.msra.mxu0 0.0
    %729 = vmatprep.subr.mxu0 0.0
    %730 = vmatpush1.msra.mxu0 0.0
    %731 = vmatprep.mubr.f32.mxu0 0.0
    %v732 = vand.u32 %v29, 4294901760
    %733 = vmatmul.mubr.f32.gmra.mrb[0].mxu0 %v732
    %v734 = vpop.f32.mrb[0].mxu0
    %v735 = vadd.f32 %v648, %v734
    %v736 = vpop.f32.mrb[0].mxu0
    %737 = vdwg.mxu0
    %v738 = vlog2.pop %v735
    %v739 = vmul.f32 %v738, 0.6931472
    %v740 = vsub.f32 %v739, %v26
    %v741 = vmul.f32 %v740, %v23
    %742 = vadd.xlane.f32.xlu0 %v741
    %v743 = vpop.xlane.xlu0 %742
    %vm744 = vcmask 7168
    %745 = vst.msk [vmem:[%s1] sm:$0xff] %vm744, %v743
    // Predicated region
    $region10: #{tpu_custom_call.1} parent=1 // pred_check
      _
    $region11: #{tpu_custom_call.1} parent=1 // pred_check_branch
      %747 = sbr.rel (0) target = $region13
    $region12: #{tpu_custom_call.1} parent=1 // pred_region
      _
    $region13: #{tpu_custom_call.1} parent=1 // pred_fallthru
      _
    // Predicated region
    $region14: #{tpu_custom_call.1} parent=1 // pred_check
      _
    $region15: #{tpu_custom_call.1} parent=1 // pred_check_branch
      %749 = sbr.rel (0) target = $region17
    $region16: #{tpu_custom_call.1} parent=1 // pred_region
      _
    $region17: #{tpu_custom_call.1} parent=1 // pred_fallthru
      _
    %750 = vsyncpa [#allocation3], 1

</llo_original>
